<compile_context>
chip_gen: v6e
topology: v6e:2x2x1
jax: 0.10.0
libtpu: 0.0.40
codegen_flags: <defaults>
</compile_context>

<pallas_src>
import math

import jax
import jax.numpy as jnp
from jax.experimental import pallas as pl
from jax.experimental.pallas import tpu as pltpu


# ~6 MiB per block; with input + output double-buffering (~4x footprint) this is
# ~24 MiB of VMEM, inside the 48 MiB scoped limit we request below and safe on
# v5e (128 MiB phys), v6e (128 MiB phys) and v7x (64 MiB phys).
_BLOCK_BYTES_BUDGET = 6 * 1024 * 1024
_VMEM_LIMIT_BYTES = 48 * 1024 * 1024


def _swap_leading_kernel(x_ref, o_ref):
    # Path 1: swap the two leading (non-lane) block axes; the rest of the
    # permutation is expressed in the BlockSpec index maps.  Lowers to vreg /
    # sublane copies, fully hidden under the HBM-bound DMAs.
    o_ref[...] = jnp.swapaxes(x_ref[...], 0, 1)


def _transpose2d_kernel(x_ref, o_ref):
    # Path 2: true lane transpose of one (ta, tl) tile -> (tl, ta); XLU work.
    o_ref[...] = x_ref[...].T


def _quantize_down(t: int, dim: int, quantum: int) -> int:
    """Round a non-full tile down to the sublane quantum (full dims kept)."""
    if t >= dim:
        return dim
    t = (t // quantum) * quantum
    if t == 0:
        t = min(quantum, dim)
    return t


def _balance_tiles(da: int, db: int, budget_elems: int, quantum: int):
    """Pick (ta, tb) with ta*tb ~<= budget_elems, roughly balanced so both the
    strided input reads (runs of tb*row_bytes) and the dense output writes
    (runs of ta*row_bytes) are large.  Non-full tiles are sublane-quantized."""
    budget_elems = max(budget_elems, 1)
    side = max(int(math.isqrt(budget_elems)), 1)
    tb = min(db, max(side, 1))
    ta = min(da, max(budget_elems // max(tb, 1), 1))
    tb = min(db, max(budget_elems // max(ta, 1), 1))
    return _quantize_down(ta, da, quantum), _quantize_down(tb, db, quantum)


def _fit_lane(dim: int, cap: int) -> int:
    """Full dim if it fits, else the largest 128-multiple <= cap (>= 128)."""
    if dim <= cap:
        return dim
    return max((cap // 128) * 128, 128)


def _balance_lane_tiles(da: int, dl: int, budget_elems: int):
    """Pick (ta, tl) for the lane-transpose path: 128-multiples (or full dims),
    roughly balanced, with ta*tl ~<= budget_elems."""
    budget_elems = max(budget_elems, 128 * 128)
    side = max(int(math.isqrt(budget_elems)), 128)
    ta = _fit_lane(da, side)
    tl = _fit_lane(dl, max(budget_elems // max(ta, 1), 128))
    ta = _fit_lane(da, max(budget_elems // max(tl, 1), 128))
    return ta, tl


def transpose_pallas(x: jax.Array, dim0: int, dim1: int) -> jax.Array:
    nd = x.ndim
    dim0 %= nd
    dim1 %= nd

    if dim0 == dim1:
        # transpose(i, i).contiguous() is the identity.
        return x

    a, b = sorted((dim0, dim1))
    perm = list(range(nd))
    perm[a], perm[b] = perm[b], perm[a]
    out_shape = tuple(x.shape[p] for p in perm)
    itemsize = x.dtype.itemsize
    # Sublane quantum: 8 rows for 4-byte, 16 for 2-byte, 32 for 1-byte dtypes.
    quantum = max(8, 32 // max(itemsize, 1))

    lead = list(range(a))            # axes before the first swapped axis
    mid = list(range(a + 1, b))      # axes strictly between the swapped pair
    n_lead, n_mid = len(lead), len(mid)

    cost = pl.CostEstimate(flops=0, transcendentals=0,
                           bytes_accessed=int(2 * x.size * itemsize))

    if b < nd - 1:
        # ---- Path 1: neither swapped axis touches the lane (last) axis ----
        trail = list(range(b + 1, nd))
        row_elems = 1
        for t in trail:
            row_elems *= x.shape[t]
        row_bytes = row_elems * itemsize
        budget_elems = max(_BLOCK_BYTES_BUDGET // max(row_bytes, 1), 1)
        ta, tb = _balance_tiles(x.shape[a], x.shape[b], budget_elems, quantum)
        n_at = pl.cdiv(x.shape[a], ta)
        n_bt = pl.cdiv(x.shape[b], tb)

        # a-tile axis innermost -> consecutive steps write adjacent output slabs.
        grid = (tuple(x.shape[i] for i in lead)
                + tuple(x.shape[i] for i in mid)
                + (n_bt, n_at))

        in_block = [None] * nd
        out_block = [None] * nd
        for i in lead + mid:
            in_block[i] = pl.Squeezed()
            out_block[i] = pl.Squeezed()
        in_block[a] = ta                 # input block: (ta, tb, *trail)
        in_block[b] = tb
        out_block[a] = tb                # output block: (tb, ta, *trail)
        out_block[b] = ta
        for i in trail:
            in_block[i] = x.shape[i]
            out_block[i] = x.shape[i]

        def in_map(*g):
            idx = [0] * nd
            for k, i in enumerate(lead):
                idx[i] = g[k]
            for k, i in enumerate(mid):
                idx[i] = g[n_lead + k]
            idx[b] = g[n_lead + n_mid]          # b-tile index
            idx[a] = g[n_lead + n_mid + 1]      # a-tile index (innermost)
            return tuple(idx)

        def out_map(*g):
            idx = [0] * nd
            for k, i in enumerate(lead):
                idx[i] = g[k]
            for k, i in enumerate(mid):
                idx[i] = g[n_lead + k]
            idx[a] = g[n_lead + n_mid]          # output axis a holds old axis b
            idx[b] = g[n_lead + n_mid + 1]      # output axis b holds old axis a
            return tuple(idx)

        kernel = _swap_leading_kernel
    else:
        # ---- Path 2: one swapped axis IS the lane (last) axis ----
        last = nd - 1
        budget_elems = max(_BLOCK_BYTES_BUDGET // max(itemsize, 1), 128 * 128)
        ta, tl = _balance_lane_tiles(x.shape[a], x.shape[last], budget_elems)
        n_at = pl.cdiv(x.shape[a], ta)
        n_lt = pl.cdiv(x.shape[last], tl)

        # TODO(synk): if x.shape[a] < 128 the output lane dim is inherently
        # masked-store bound; fusing the permutation into the consumer's
        # index_map avoids materializing it at all.
        grid = (tuple(x.shape[i] for i in lead)
                + tuple(x.shape[i] for i in mid)
                + (n_lt, n_at))

        in_block = [None] * nd
        out_block = [None] * nd
        for i in lead + mid:
            in_block[i] = pl.Squeezed()
            out_block[i] = pl.Squeezed()
        in_block[a] = ta
        in_block[last] = tl
        out_block[a] = tl                # output axis a holds old last axis
        out_block[last] = ta             # output last axis holds old axis a

        def in_map(*g):
            idx = [0] * nd
            for k, i in enumerate(lead):
                idx[i] = g[k]
            for k, i in enumerate(mid):
                idx[i] = g[n_lead + k]
            idx[last] = g[n_lead + n_mid]       # lane-tile index
            idx[a] = g[n_lead + n_mid + 1]      # a-tile index (innermost)
            return tuple(idx)

        def out_map(*g):
            idx = [0] * nd
            for k, i in enumerate(lead):
                idx[i] = g[k]
            for k, i in enumerate(mid):
                idx[i] = g[n_lead + k]
            idx[a] = g[n_lead + n_mid]          # output axis a <- old last
            idx[last] = g[n_lead + n_mid + 1]   # output last  <- old axis a
            return tuple(idx)

        kernel = _transpose2d_kernel

    return pl.pallas_call(
        kernel,
        grid_spec=pltpu.PrefetchScalarGridSpec(
            num_scalar_prefetch=0,
            grid=grid,
            in_specs=[pl.BlockSpec(tuple(in_block), in_map)],
            out_specs=pl.BlockSpec(tuple(out_block), out_map),
        ),
        out_shape=jax.ShapeDtypeStruct(out_shape, x.dtype),
        compiler_params=pltpu.CompilerParams(
            dimension_semantics=("parallel",) * len(grid),
            vmem_limit_bytes=_VMEM_LIMIT_BYTES),
        cost_estimate=cost,
    )(x)


class Transpose:
    """Mirror of the PyTorch module: x.transpose(dim0, dim1).contiguous()."""

    def __init__(self, dim0: int, dim1: int):
        self.dim0 = dim0
        self.dim1 = dim1

    def __call__(self, x: jax.Array) -> jax.Array:
        return transpose_pallas(x, self.dim0, self.dim1)


if __name__ == "__main__":
    key = jax.random.PRNGKey(0)
    k1, k2, k3 = jax.random.split(key, 3)

    # Mirrors `Transpose(1, 2)` applied to a [B, S, H, D] tensor (lane-dense D).
    B, S, H, D = 2, 8, 16, 128
    x = jax.random.normal(k1, (B, S, H, D), dtype=jnp.float32)

    # Path 1: neither swapped axis is the lane axis -> tiled swap-copy.
    out = jax.block_until_ready(Transpose(1, 2)(x))
    ref = jnp.swapaxes(x, 1, 2)
    assert out.shape == ref.shape and out.dtype == ref.dtype
    assert bool(jnp.all(out == ref)), "mismatch: transpose(1, 2)"

    # Path 1 with an axis in between the swapped pair: transpose(0, 2).
    out02 = jax.block_until_ready(Transpose(0, 2)(x))
    ref02 = jnp.swapaxes(x, 0, 2)
    assert out02.shape == ref02.shape
    assert bool(jnp.all(out02 == ref02)), "mismatch: transpose(0, 2)"

    # Path 1 with a packed dtype (bf16): sublane quantum = 16.
    xb = x.astype(jnp.bfloat16)
    outb = jax.block_until_ready(Transpose(1, 2)(xb))
    refb = jnp.swapaxes(xb, 1, 2)
    assert outb.dtype == refb.dtype
    assert bool(jnp.all(outb == refb)), "mismatch: transpose(1, 2) bf16"

    # Path 2: swapping with the last (lane) axis -> in-VMEM tile transpose.
    x2 = jax.random.normal(k2, (2, 4, 128, 128), dtype=jnp.float32)
    out23 = jax.block_until_ready(Transpose(2, 3)(x2))
    ref23 = jnp.swapaxes(x2, 2, 3)
    assert out23.shape == ref23.shape
    assert bool(jnp.all(out23 == ref23)), "mismatch: transpose(2, 3)"

    # Degenerate: transpose(1, 1) is the identity (returned without a kernel).
    out11 = jax.block_until_ready(Transpose(1, 1)(x))
    assert bool(jnp.all(out11 == x)), "mismatch: transpose(1, 1)"

    print("KERNEL_OK")
</pallas_src>

<mosaic_0001>
module attributes {stable_mosaic.version = 11 : i64} {
  func.func @_swap_leading_kernel(%arg0: i32, %arg1: i32, %arg2: i32, %arg3: memref<1x8x16x128xf32, #tpu.memory_space<vmem>>, %arg4: memref<1x16x8x128xf32, #tpu.memory_space<vmem>>) attributes {dimension_semantics = [#tpu.dimension_semantics<parallel>, #tpu.dimension_semantics<parallel>, #tpu.dimension_semantics<parallel>], iteration_bounds = array<i64: 2, 1, 1>, scalar_prefetch = 0 : i64, scratch_operands = 0 : i64, tpu.core_type = #tpu.core_type<tc>, window_params = [{transform_indices = @transform_0, window_bounds = array<i64: 1, 8, 16, 128>}, {transform_indices = @transform_1, window_bounds = array<i64: 1, 16, 8, 128>}]} {
    %c0 = arith.constant 0 : index
    %c0_0 = arith.constant 0 : index
    %c0_1 = arith.constant 0 : index
    %c0_2 = arith.constant 0 : index
    %0 = vector.load %arg3[%c0, %c0_0, %c0_1, %c0_2] : memref<1x8x16x128xf32, #tpu.memory_space<vmem>>, vector<1x8x16x128xf32>
    %1 = vector.shape_cast %0 : vector<1x8x16x128xf32> to vector<8x16x128xf32>
    %2 = tpu.transpose %1, [1, 0, 2] : vector<8x16x128xf32> -> vector<16x8x128xf32>
    %c0_3 = arith.constant 0 : index
    %c0_4 = arith.constant 0 : index
    %c0_5 = arith.constant 0 : index
    %c0_6 = arith.constant 0 : index
    %3 = vector.load %arg4[%c0_3, %c0_4, %c0_5, %c0_6] : memref<1x16x8x128xf32, #tpu.memory_space<vmem>>, vector<1x16x8x128xf32>
    %4 = vector.shape_cast %3 : vector<1x16x8x128xf32> to vector<16x8x128xf32>
    %5 = vector.shape_cast %2 : vector<16x8x128xf32> to vector<1x16x8x128xf32>
    tpu.vector_store %arg4[%c0_3, %c0_4, %c0_5, %c0_6], %5 {strides = array<i32>} : memref<1x16x8x128xf32, #tpu.memory_space<vmem>>, vector<1x16x8x128xf32>,
    return
  }
  func.func @transform_0(%arg0: i32, %arg1: i32, %arg2: i32) -> (i32, i32, i32, i32) {
    %c0_i32 = arith.constant 0 : i32
    %c0_i32_0 = arith.constant 0 : i32
    return %arg0, %arg2, %arg1, %c0_i32 : i32, i32, i32, i32
  }
  func.func @transform_1(%arg0: i32, %arg1: i32, %arg2: i32) -> (i32, i32, i32, i32) {
    %c0_i32 = arith.constant 0 : i32
    %c0_i32_0 = arith.constant 0 : i32
    return %arg0, %arg1, %arg2, %c0_i32 : i32, i32, i32, i32
  }
}

</mosaic_0001>

<llo_original>
// kernel: tpu_custom_call.1
$region0: #{tpu_custom_call.1}
  #allocation0 [shape = 'u32[]', space=smem, size = 0x4, offset = 0x4, fixed_abs, tag = 'smem constant byte address 0x4 - core index']
  #allocation1 [shape = 'u32[144,128]{1,0:T(1,128)}', space=vmem, size = 0x12000, scoped, tag = 'internal scratch']
  %s0 = inlined_call_operand.hbm [shape: f32[2,8,16,128], index: 0, kind: input, shape index: {}]
  %s1 = inlined_call_operand.hbm [shape: f32[2,16,8,128], index: 1, kind: output, shape index: {}]
  %s2 = sld [smem:[#allocation0]]
  $region41: #{tpu_custom_call.1} parent=0
    _
  %s4 = ssub.s32 1, %s2
  %s5 = scalar_select 0, %s4, %s2
  $region1: #{tpu_custom_call.1} parent=0
    #allocation2 [shape = 'u8[131072]{0}', space=vmem, size = 0x20000, scoped, tag = 'input window, operand 0']
    #allocation3 [shape = 's32[2]{0}', space=sflag, size = 0x8, scoped, tag = 'scoped memory for tpu_custom_call.1']
    #allocation4 [shape = 's32[2]{0}', space=sflag, size = 0x8, scoped, tag = 'scoped memory for tpu_custom_call.1']
    #allocation5 [shape = 'u8[131072]{0}', space=vmem, size = 0x20000, scoped, tag = 'output window, operand 0']
    %6 = vsyncpa [#allocation3], 0
    %s7 = scalar_lea.sflag [#allocation3], 1
    %8 = vsyncpa %s7, 0
    %9 = vsyncpa [#allocation4], 0
    %s10 = scalar_lea.sflag [#allocation4], 1
    %11 = vsyncpa %s10, 0
    loop: start=0, step=1, limit=4
    $region2: #{tpu_custom_call.1} parent=1 // loop_pre_header
      _
    $region3: #{tpu_custom_call.1} parent=1 // loop_header
      %s13 = sphi 0, %s17
      %p14 = scmp.ge.s32.totalorder %s13, 4
      %s20 = sphi 0, %s39
      %s21 = sphi 0, %s35
      %s22 = sphi 0, %s31
      %s23 = sphi 0, %s20
      %s24 = sphi 0, %s21
      %s25 = sphi 0, %s22
      %s26 = sphi 0, %s23
      %s27 = sphi 0, %s24
      %s28 = sphi 0, %s25
      %s46 = sphi 0, %s48
      %s49 = sphi 0, %s46
      %s50 = sphi 0, %s49
      %s66 = sphi 0, %s50
      %s76 = sphi 0, %s78
      %s79 = sphi 0, %s76
      %s80 = sphi 0, %s79
      %s96 = sphi 0, %s80
    $region4: #{tpu_custom_call.1} parent=1 // loop_header_branch
      %16 = sbr.rel (%p14) target = $region8
    $region5: #{tpu_custom_call.1} parent=1 // loop_body
      %s18 = ssub.s32 %s13, 1
      %s19 = ssub.s32 %s13, 2
      %s29 = sadd.s32 1, %s22
      %p30 = scmp.ge.s32.totalorder %s29, 1
      %s31 = scalar_select %p30, 0, %s29
      %s32 = sadd.s32 1, %s21
      %s33 = scalar_select %p30, %s32, %s21
      %p34 = scmp.ge.s32.totalorder %s33, 1
      %s35 = scalar_select %p34, 0, %s33
      %s36 = sadd.s32 1, %s20
      %s37 = scalar_select %p34, %s36, %s20
      %p38 = scmp.ge.s32.totalorder %s37, 2
      %s39 = scalar_select %p38, 0, %s37
      %s40 = ssub.s32 %s20, %s39
      %s41 = ssub.s32 %s22, %s31
      %s42 = sor.u32 %s40, %s41
      %s43 = ssub.s32 %s21, %s35
      %s44 = sor.u32 %s42, %s43
      %p45 = scmp.eq.s32.totalorder %s44, 0
      %s47 = sadd.s32 %s46, 1
      %s48 = scalar_select %p45, %s46, %s47
      %p51 = pneg %p45
      %p52 = scmp.eq.s32.totalorder %s13, 1
      %p53 = por %p51, %p52
      %p54 = scmp.ne.s32.totalorder %s46, %s49
      %p55 = scmp.eq.s32.totalorder %s13, 0
      %p56 = por %p54, %p55
      %p57 = scmp.ne.s32.totalorder %s46, %s49
      %p58 = scmp.eq.s32.totalorder %s18, 1
      %p59 = por %p57, %p58
      %p60 = scmp.ne.s32.totalorder %s49, %s50
      %p61 = scmp.eq.s32.totalorder %s18, 0
      %p62 = por %p60, %p61
      %p63 = scmp.ne.s32.totalorder %s49, %s50
      %p64 = scmp.eq.s32.totalorder %s19, 1
      %p65 = por %p63, %p64
      %p67 = scmp.ne.s32.totalorder %s50, %s66
      %p68 = scmp.eq.s32.totalorder %s19, 0
      %p69 = por %p67, %p68
      %s70 = ssub.s32 %s20, %s39
      %s71 = ssub.s32 %s21, %s35
      %s72 = sor.u32 %s70, %s71
      %s73 = ssub.s32 %s22, %s31
      %s74 = sor.u32 %s72, %s73
      %p75 = scmp.eq.s32.totalorder %s74, 0
      %s77 = sadd.s32 %s76, 1
      %s78 = scalar_select %p75, %s76, %s77
      %p81 = pneg %p75
      %p82 = scmp.eq.s32.totalorder %s13, 1
      %p83 = por %p81, %p82
      %p84 = scmp.ne.s32.totalorder %s76, %s79
      %p85 = scmp.eq.s32.totalorder %s13, 0
      %p86 = por %p84, %p85
      %p87 = scmp.ne.s32.totalorder %s76, %s79
      %p88 = scmp.eq.s32.totalorder %s18, 1
      %p89 = por %p87, %p88
      %p90 = scmp.ne.s32.totalorder %s79, %s80
      %p91 = scmp.eq.s32.totalorder %s18, 0
      %p92 = por %p90, %p91
      %p93 = scmp.ne.s32.totalorder %s79, %s80
      %p94 = scmp.eq.s32.totalorder %s19, 1
      %p95 = por %p93, %p94
      %p97 = scmp.ne.s32.totalorder %s80, %s96
      %p98 = scmp.eq.s32.totalorder %s19, 0
      %p99 = por %p97, %p98
      %p100 = scmp.le.s32.totalorder 1, %s13
      %p101 = scmp.lt.s32.totalorder %s13, 3
      %p102 = pnand %p100, %p101
      %p103 = pneg %p102
      // Predicated region
      $region9: #{tpu_custom_call.1} parent=5 // pred_check
        _
      $region10: #{tpu_custom_call.1} parent=5 // pred_check_branch
        %105 = sbr.rel (%p102) target = $region12
      $region11: #{tpu_custom_call.1} parent=5 // pred_region
        %s106 = ssub.s32 %s13, 1
      $region12: #{tpu_custom_call.1} parent=5 // pred_fallthru
        _
      %p107 = scmp.lt.s32.totalorder %s13, 2
      // Predicated region
      $region13: #{tpu_custom_call.1} parent=5 // pred_check
        %p108 = pneg %p107
      $region14: #{tpu_custom_call.1} parent=5 // pred_check_branch
        %110 = sbr.rel (%p108) target = $region16
      $region15: #{tpu_custom_call.1} parent=5 // pred_region
        // Predicated region
        $region17: #{tpu_custom_call.1} parent=15 // pred_check
          %p111 = pneg %p56
        $region18: #{tpu_custom_call.1} parent=15 // pred_check_branch
          %113 = sbr.rel (%p111) target = $region20
        $region19: #{tpu_custom_call.1} parent=15 // pred_region
          %s114 = sand.u32 %s46, 1
          %s115 = scalar_lea.sflag [#allocation3], %s114
          %s116 = sand.u32 %s46, 1
          %s117 = smul.addr %s116, 128
          %s118 = scalar_lea.vmem [#allocation2], %s117
          %s119 = smul.u32 8, %s22
          %s120 = smul.u32 2, %s21
          %s122 = ssub.s32 2048, 2048
          %123 = vsyncadd %s115, %s122
          %s124 = smul.addr %s119, 2
          %s125 = sadd.s32 %s120, %s124
          %s126 = smul.addr %s20, 16
          %s127 = sadd.s32 %s125, %s126
          %s128 = smul.addr %s127, 128
          %s129 = scalar_lea.hbm %s0, %s128
          %s130 = sshll.u32 %s118, 4
          %s131 = int_to_ptr.vmem [resolvable:$true] %s130
          %136 = dma.hbm_to_vmem [thread:$0]  %s129, 2048, %s131, %s115, 128, 128, 8
        $region20: #{tpu_custom_call.1} parent=15 // pred_fallthru
          _
      $region16: #{tpu_custom_call.1} parent=5 // pred_fallthru
        _
      %p137 = scmp.le.s32.totalorder 1, %s13
      %p138 = scmp.lt.s32.totalorder %s13, 3
      %p139 = pnand %p137, %p138
      %p140 = pneg %p139
      // Predicated region
      $region21: #{tpu_custom_call.1} parent=5 // pred_check
        _
      $region22: #{tpu_custom_call.1} parent=5 // pred_check_branch
        %142 = sbr.rel (%p139) target = $region24
      $region23: #{tpu_custom_call.1} parent=5 // pred_region
        %s143 = ssub.s32 %s13, 1
        %s144 = sand.u32 %s49, 1
        %s145 = scalar_lea.sflag [#allocation3], %s144
        %s146 = sand.u32 %s49, 1
        %s147 = smul.addr %s146, 128
        %s148 = scalar_lea.vmem [#allocation2], %s147
        // Predicated region
        $region25: #{tpu_custom_call.1} parent=23 // pred_check
          %p149 = pneg %p62
        $region26: #{tpu_custom_call.1} parent=23 // pred_check_branch
          %151 = sbr.rel (%p149) target = $region28
        $region27: #{tpu_custom_call.1} parent=23 // pred_region
          %152 = dma.done %s145, 2048
        $region28: #{tpu_custom_call.1} parent=23 // pred_fallthru
          _
        %s153 = sand.u32 %s49, 1
        %s154 = scalar_lea.sflag [#allocation3], %s153
        %s155 = sand.u32 %s49, 1
        %s156 = smul.addr %s155, 128
        %s157 = scalar_lea.vmem [#allocation2], %s156
        %p158 = pneg %p62
        %p159 = pneg %p59
        %p160 = pneg %p92
        %p161 = pneg %p89
        %s162 = sand.u32 %s79, 1
        %s163 = scalar_lea.sflag [#allocation4], %s162
        %s164 = sand.u32 %s79, 1
        %s165 = smul.addr %s164, 128
        %s166 = scalar_lea.vmem [#allocation5], %s165
        %s167 = smul.u32 8, %s25
        %s168 = smul.u32 2, %s24
        %s169 = smul.u32 16, %s24
        %v170 = vld [vmem:[%s148] sm:$0xff]
        %v171 = vld [vmem:[%s148 + $0x8] sm:$0xff]
        %v172 = vld [vmem:[%s148 + $0x10] sm:$0xff]
        %v173 = vld [vmem:[%s148 + $0x18] sm:$0xff]
        %v174 = vld [vmem:[%s148 + $0x20] sm:$0xff]
        %v175 = vld [vmem:[%s148 + $0x28] sm:$0xff]
        %v176 = vld [vmem:[%s148 + $0x30] sm:$0xff]
        %v177 = vld [vmem:[%s148 + $0x38] sm:$0xff]
        %v178 = vld [vmem:[%s148 + $0x40] sm:$0xff]
        %v179 = vld [vmem:[%s148 + $0x48] sm:$0xff]
        %v180 = vld [vmem:[%s148 + $0x50] sm:$0xff]
        %v181 = vld [vmem:[%s148 + $0x58] sm:$0xff]
        %v182 = vld [vmem:[%s148 + $0x60] sm:$0xff]
        %v183 = vld [vmem:[%s148 + $0x68] sm:$0xff]
        %v184 = vld [vmem:[%s148 + $0x70] sm:$0xff]
        %v185 = vld [vmem:[%s148 + $0x78] sm:$0xff]
        %v186 = vcombine.low %v170, %v174
        %v187 = vcombine.high %v170, %v174
        %v189 = vunpack.c.l.s4 1983009808
        %v190 = vunpack.c.0.s8 %v189
        %v191 = vlaneseq
        %v192 = vshrl.u32 %v191, 7
        %v193 = vsub.s32 %v190, %v192
        %v194 = vrot.slane %v186, %v193
        %v196 = vunpack.c.l.s4 1983009808
        %v197 = vunpack.c.0.s8 %v196
        %v198 = vlaneseq
        %v199 = vshrl.u32 %v198, 7
        %v200 = vsub.s32 %v197, %v199
        %v201 = vrot.slane %v187, %v200
        %v202 = vcombine.low %v172, %v176
        %v203 = vcombine.high %v172, %v176
        %v205 = vunpack.c.l.s4 1983009808
        %v206 = vunpack.c.0.s8 %v205
        %v207 = vlaneseq
        %v208 = vshrl.u32 %v207, 7
        %v209 = vsub.s32 %v206, %v208
        %v210 = vrot.slane %v202, %v209
        %v212 = vunpack.c.l.s4 1983009808
        %v213 = vunpack.c.0.s8 %v212
        %v214 = vlaneseq
        %v215 = vshrl.u32 %v214, 7
        %v216 = vsub.s32 %v213, %v215
        %v217 = vrot.slane %v203, %v216
        %v218 = vcombine.low %v178, %v182
        %v219 = vcombine.high %v178, %v182
        %v221 = vunpack.c.l.s4 1983009808
        %v222 = vunpack.c.0.s8 %v221
        %v223 = vlaneseq
        %v224 = vshrl.u32 %v223, 7
        %v225 = vsub.s32 %v222, %v224
        %v226 = vrot.slane %v218, %v225
        %v228 = vunpack.c.l.s4 1983009808
        %v229 = vunpack.c.0.s8 %v228
        %v230 = vlaneseq
        %v231 = vshrl.u32 %v230, 7
        %v232 = vsub.s32 %v229, %v231
        %v233 = vrot.slane %v219, %v232
        %v234 = vcombine.low %v180, %v184
        %v235 = vcombine.high %v180, %v184
        %v237 = vunpack.c.l.s4 1983009808
        %v238 = vunpack.c.0.s8 %v237
        %v239 = vlaneseq
        %v240 = vshrl.u32 %v239, 7
        %v241 = vsub.s32 %v238, %v240
        %v242 = vrot.slane %v234, %v241
        %v244 = vunpack.c.l.s4 1983009808
        %v245 = vunpack.c.0.s8 %v244
        %v246 = vlaneseq
        %v247 = vshrl.u32 %v246, 7
        %v248 = vsub.s32 %v245, %v247
        %v249 = vrot.slane %v235, %v248
        %v250 = vcombine.low %v194, %v210
        %v251 = vcombine.high %v194, %v210
        %v253 = vunpack.c.l.s4 1934713408
        %v254 = vunpack.c.0.s8 %v253
        %v255 = vlaneseq
        %v256 = vshrl.u32 %v255, 7
        %v257 = vsub.s32 %v254, %v256
        %v258 = vrot.slane %v250, %v257
        %v260 = vunpack.c.l.s4 1934713408
        %v261 = vunpack.c.0.s8 %v260
        %v262 = vlaneseq
        %v263 = vshrl.u32 %v262, 7
        %v264 = vsub.s32 %v261, %v263
        %v265 = vrot.slane %v251, %v264
        %v266 = vcombine.low %v201, %v217
        %v267 = vcombine.high %v201, %v217
        %v269 = vunpack.c.l.s4 1934713408
        %v270 = vunpack.c.0.s8 %v269
        %v271 = vlaneseq
        %v272 = vshrl.u32 %v271, 7
        %v273 = vsub.s32 %v270, %v272
        %v274 = vrot.slane %v266, %v273
        %v276 = vunpack.c.l.s4 1934713408
        %v277 = vunpack.c.0.s8 %v276
        %v278 = vlaneseq
        %v279 = vshrl.u32 %v278, 7
        %v280 = vsub.s32 %v277, %v279
        %v281 = vrot.slane %v267, %v280
        %v282 = vcombine.low %v226, %v242
        %v283 = vcombine.high %v226, %v242
        %v285 = vunpack.c.l.s4 1934713408
        %v286 = vunpack.c.0.s8 %v285
        %v287 = vlaneseq
        %v288 = vshrl.u32 %v287, 7
        %v289 = vsub.s32 %v286, %v288
        %v290 = vrot.slane %v282, %v289
        %v292 = vunpack.c.l.s4 1934713408
        %v293 = vunpack.c.0.s8 %v292
        %v294 = vlaneseq
        %v295 = vshrl.u32 %v294, 7
        %v296 = vsub.s32 %v293, %v295
        %v297 = vrot.slane %v283, %v296
        %v298 = vcombine.low %v233, %v249
        %v299 = vcombine.high %v233, %v249
        %v301 = vunpack.c.l.s4 1934713408
        %v302 = vunpack.c.0.s8 %v301
        %v303 = vlaneseq
        %v304 = vshrl.u32 %v303, 7
        %v305 = vsub.s32 %v302, %v304
        %v306 = vrot.slane %v298, %v305
        %v308 = vunpack.c.l.s4 1934713408
        %v309 = vunpack.c.0.s8 %v308
        %v310 = vlaneseq
        %v311 = vshrl.u32 %v310, 7
        %v312 = vsub.s32 %v309, %v311
        %v313 = vrot.slane %v299, %v312
        %v314 = vcombine.low %v258, %v290
        %v315 = vcombine.high %v258, %v290
        %v316 = vcombine.low %v265, %v297
        %v317 = vcombine.high %v265, %v297
        %v318 = vcombine.low %v274, %v306
        %v319 = vcombine.high %v274, %v306
        %v320 = vcombine.low %v281, %v313
        %v321 = vcombine.high %v281, %v313
        %v322 = vcombine.low %v171, %v175
        %v323 = vcombine.high %v171, %v175
        %v325 = vunpack.c.l.s4 1983009808
        %v326 = vunpack.c.0.s8 %v325
        %v327 = vlaneseq
        %v328 = vshrl.u32 %v327, 7
        %v329 = vsub.s32 %v326, %v328
        %v330 = vrot.slane %v322, %v329
        %v332 = vunpack.c.l.s4 1983009808
        %v333 = vunpack.c.0.s8 %v332
        %v334 = vlaneseq
        %v335 = vshrl.u32 %v334, 7
        %v336 = vsub.s32 %v333, %v335
        %v337 = vrot.slane %v323, %v336
        %v338 = vcombine.low %v173, %v177
        %v339 = vcombine.high %v173, %v177
        %v341 = vunpack.c.l.s4 1983009808
        %v342 = vunpack.c.0.s8 %v341
        %v343 = vlaneseq
        %v344 = vshrl.u32 %v343, 7
        %v345 = vsub.s32 %v342, %v344
        %v346 = vrot.slane %v338, %v345
        %v348 = vunpack.c.l.s4 1983009808
        %v349 = vunpack.c.0.s8 %v348
        %v350 = vlaneseq
        %v351 = vshrl.u32 %v350, 7
        %v352 = vsub.s32 %v349, %v351
        %v353 = vrot.slane %v339, %v352
        %v354 = vcombine.low %v179, %v183
        %v355 = vcombine.high %v179, %v183
        %v357 = vunpack.c.l.s4 1983009808
        %v358 = vunpack.c.0.s8 %v357
        %v359 = vlaneseq
        %v360 = vshrl.u32 %v359, 7
        %v361 = vsub.s32 %v358, %v360
        %v362 = vrot.slane %v354, %v361
        %v364 = vunpack.c.l.s4 1983009808
        %v365 = vunpack.c.0.s8 %v364
        %v366 = vlaneseq
        %v367 = vshrl.u32 %v366, 7
        %v368 = vsub.s32 %v365, %v367
        %v369 = vrot.slane %v355, %v368
        %v370 = vcombine.low %v181, %v185
        %v371 = vcombine.high %v181, %v185
        %v373 = vunpack.c.l.s4 1983009808
        %v374 = vunpack.c.0.s8 %v373
        %v375 = vlaneseq
        %v376 = vshrl.u32 %v375, 7
        %v377 = vsub.s32 %v374, %v376
        %v378 = vrot.slane %v370, %v377
        %v380 = vunpack.c.l.s4 1983009808
        %v381 = vunpack.c.0.s8 %v380
        %v382 = vlaneseq
        %v383 = vshrl.u32 %v382, 7
        %v384 = vsub.s32 %v381, %v383
        %v385 = vrot.slane %v371, %v384
        %v386 = vcombine.low %v330, %v346
        %v387 = vcombine.high %v330, %v346
        %v389 = vunpack.c.l.s4 1934713408
        %v390 = vunpack.c.0.s8 %v389
        %v391 = vlaneseq
        %v392 = vshrl.u32 %v391, 7
        %v393 = vsub.s32 %v390, %v392
        %v394 = vrot.slane %v386, %v393
        %v396 = vunpack.c.l.s4 1934713408
        %v397 = vunpack.c.0.s8 %v396
        %v398 = vlaneseq
        %v399 = vshrl.u32 %v398, 7
        %v400 = vsub.s32 %v397, %v399
        %v401 = vrot.slane %v387, %v400
        %v402 = vcombine.low %v337, %v353
        %v403 = vcombine.high %v337, %v353
        %v405 = vunpack.c.l.s4 1934713408
        %v406 = vunpack.c.0.s8 %v405
        %v407 = vlaneseq
        %v408 = vshrl.u32 %v407, 7
        %v409 = vsub.s32 %v406, %v408
        %v410 = vrot.slane %v402, %v409
        %v412 = vunpack.c.l.s4 1934713408
        %v413 = vunpack.c.0.s8 %v412
        %v414 = vlaneseq
        %v415 = vshrl.u32 %v414, 7
        %v416 = vsub.s32 %v413, %v415
        %v417 = vrot.slane %v403, %v416
        %v418 = vcombine.low %v362, %v378
        %v419 = vcombine.high %v362, %v378
        %v421 = vunpack.c.l.s4 1934713408
        %v422 = vunpack.c.0.s8 %v421
        %v423 = vlaneseq
        %v424 = vshrl.u32 %v423, 7
        %v425 = vsub.s32 %v422, %v424
        %v426 = vrot.slane %v418, %v425
        %v428 = vunpack.c.l.s4 1934713408
        %v429 = vunpack.c.0.s8 %v428
        %v430 = vlaneseq
        %v431 = vshrl.u32 %v430, 7
        %v432 = vsub.s32 %v429, %v431
        %v433 = vrot.slane %v419, %v432
        %v434 = vcombine.low %v369, %v385
        %v435 = vcombine.high %v369, %v385
        %v437 = vunpack.c.l.s4 1934713408
        %v438 = vunpack.c.0.s8 %v437
        %v439 = vlaneseq
        %v440 = vshrl.u32 %v439, 7
        %v441 = vsub.s32 %v438, %v440
        %v442 = vrot.slane %v434, %v441
        %v444 = vunpack.c.l.s4 1934713408
        %v445 = vunpack.c.0.s8 %v444
        %v446 = vlaneseq
        %v447 = vshrl.u32 %v446, 7
        %v448 = vsub.s32 %v445, %v447
        %v449 = vrot.slane %v435, %v448
        %v450 = vcombine.low %v394, %v426
        %v451 = vcombine.high %v394, %v426
        %v452 = vcombine.low %v401, %v433
        %v453 = vcombine.high %v401, %v433
        %v454 = vcombine.low %v410, %v442
        %v455 = vcombine.high %v410, %v442
        %v456 = vcombine.low %v417, %v449
        %v457 = vcombine.high %v417, %v449
        %458 = vst [vmem:[%s166] sm:$0xff] %v314
        %459 = vst [vmem:[%s166 + $0x8] sm:$0xff] %v315
        %460 = vst [vmem:[%s166 + $0x10] sm:$0xff] %v316
        %461 = vst [vmem:[%s166 + $0x18] sm:$0xff] %v317
        %462 = vst [vmem:[%s166 + $0x20] sm:$0xff] %v318
        %463 = vst [vmem:[%s166 + $0x28] sm:$0xff] %v319
        %464 = vst [vmem:[%s166 + $0x30] sm:$0xff] %v320
        %465 = vst [vmem:[%s166 + $0x38] sm:$0xff] %v321
        %466 = vst [vmem:[%s166 + $0x40] sm:$0xff] %v450
        %467 = vst [vmem:[%s166 + $0x48] sm:$0xff] %v451
        %468 = vst [vmem:[%s166 + $0x50] sm:$0xff] %v452
        %469 = vst [vmem:[%s166 + $0x58] sm:$0xff] %v453
        %470 = vst [vmem:[%s166 + $0x60] sm:$0xff] %v454
        %471 = vst [vmem:[%s166 + $0x68] sm:$0xff] %v455
        %472 = vst [vmem:[%s166 + $0x70] sm:$0xff] %v456
        %473 = vst [vmem:[%s166 + $0x78] sm:$0xff] %v457
        %s474 = sand.u32 %s79, 1
        %s475 = scalar_lea.sflag [#allocation4], %s474
        %s476 = sand.u32 %s79, 1
        %s477 = smul.addr %s476, 128
        %s478 = scalar_lea.vmem [#allocation5], %s477
        // Predicated region
        $region29: #{tpu_custom_call.1} parent=23 // pred_check
          %p479 = pneg %p89
        $region30: #{tpu_custom_call.1} parent=23 // pred_check_branch
          %481 = sbr.rel (%p479) target = $region32
        $region31: #{tpu_custom_call.1} parent=23 // pred_region
          %s482 = smul.u32 16, %s24
          %s484 = ssub.s32 2048, 2048
          %485 = vsyncadd %s475, %s484
          %s486 = sadd.s32 %s25, %s482
          %s487 = smul.addr %s23, 16
          %s488 = sadd.s32 %s486, %s487
          %s489 = smul.addr %s488, 128
          %s490 = scalar_lea.hbm %s1, %s489
          %s491 = sshll.u32 %s478, 4
          %s492 = int_to_ptr.vmem [resolvable:$true] %s491
          %497 = dma.vmem_to_hbm [thread:$0]  %s492, 2048, %s490, %s475, 128, 128, 8
        $region32: #{tpu_custom_call.1} parent=23 // pred_fallthru
          _
      $region24: #{tpu_custom_call.1} parent=5 // pred_fallthru
        _
      %p498 = scmp.le.s32.totalorder 2, %s13
      // Predicated region
      $region33: #{tpu_custom_call.1} parent=5 // pred_check
        %p499 = pneg %p498
      $region34: #{tpu_custom_call.1} parent=5 // pred_check_branch
        %501 = sbr.rel (%p499) target = $region36
      $region35: #{tpu_custom_call.1} parent=5 // pred_region
        %s502 = ssub.s32 %s13, 2
        // Predicated region
        $region37: #{tpu_custom_call.1} parent=35 // pred_check
          %p503 = pneg %p95
        $region38: #{tpu_custom_call.1} parent=35 // pred_check_branch
          %505 = sbr.rel (%p503) target = $region40
        $region39: #{tpu_custom_call.1} parent=35 // pred_region
          %s506 = sand.u32 %s80, 1
          %s507 = scalar_lea.sflag [#allocation4], %s506
          %s508 = sand.u32 %s80, 1
          %s509 = smul.addr %s508, 128
          %s510 = scalar_lea.vmem [#allocation5], %s509
          %511 = dma.done %s507, 2048
        $region40: #{tpu_custom_call.1} parent=35 // pred_fallthru
          _
      $region36: #{tpu_custom_call.1} parent=5 // pred_fallthru
        _
    $region6: #{tpu_custom_call.1} parent=1 // loop_footer
      %s17 = sadd.s32 1, %s13
    $region7: #{tpu_custom_call.1} parent=1 // loop_footer_branch
      %12 = sbr.rel target = $region3
    $region8: #{tpu_custom_call.1} parent=1 // loop_exit
      _
    %512 = vsyncpa [#allocation3], 1
    %s513 = scalar_lea.sflag [#allocation3], 1
    %514 = vsyncpa %s513, 1
    %515 = vsyncpa [#allocation4], 1
    %s516 = scalar_lea.sflag [#allocation4], 1
    %517 = vsyncpa %s516, 1

</llo_original>
